<compile_context>
chip_gen: v7x
topology: tpu7x:2x2x1
jax: 0.10.0
libtpu: 0.0.40
codegen_flags: <defaults>
</compile_context>

<pallas_src>
import jax
import jax.numpy as jnp
from jax.experimental import pallas as pl
from jax.experimental.pallas import tpu as pltpu


def _make_conv_relu_kernel(H, W, Cin, Cout, KH, Wp):
    """Conv3x3(pad=1) + bias + ReLU for one image, as one MXU matmul."""
    WCout = W * Cout

    def conv_relu_kernel(x_ref, w_ref, b_ref, o_ref):
        # x_ref: (1, Hp, Wp*Cin)     -- padded input image, 2-D lane layout
        # w_ref: (KH*Wp*Cin, W*Cout) -- block-Toeplitz conv weight
        # b_ref: (1, W*Cout)         -- bias tiled across the W positions
        # o_ref: (1, H, W*Cout)      -- lane-dense output (512 lanes)
        x = x_ref[0]  # (Hp, Wp*Cin)

        # Row patch: row h holds the KH input rows of the receptive field
        # back-to-back along the lane axis (sublane shifts only).
        patch = jnp.concatenate([x[kh:kh + H, :] for kh in range(KH)], axis=1)

        # Single MXU matmul (M=H, K=KH*Wp*Cin, N=W*Cout), f32 accumulation.
        acc = jnp.dot(patch, w_ref[...], preferred_element_type=jnp.float32)
        acc = acc + b_ref[...]                       # one VPU pass for bias
        o_ref[...] = jnp.maximum(acc, 0.0)[None]     # unmasked lane-dense store

    return conv_relu_kernel


def base_cnn_forward(x_nchw, w_oihw, b):
    """Forward pass of the (concrete) BaseCNN: conv3x3(pad=1) + ReLU.

    x_nchw : (N, Cin, H, W)  float32   (PyTorch NCHW convention)
    w_oihw : (Cout, Cin, KH, KW) float32
    b      : (Cout,) float32
    returns: (N, Cout, H, W) float32
    """
    N, Cin, H, W = x_nchw.shape
    Cout, Cin_w, KH, KW = w_oihw.shape
    assert Cin_w == Cin
    pad_h, pad_w = KH // 2, KW // 2
    Hp, Wp = H + 2 * pad_h, W + 2 * pad_w

    # ---- layout plumbing (plain JAX glue) ----
    x_nhwc = jnp.transpose(x_nchw, (0, 2, 3, 1)).astype(jnp.float32)
    # TODO(synk): wrapper-side pad costs an extra HBM round trip at CNN-scale
    #             shapes; negligible at 16x16x4.
    x_pad = jnp.pad(x_nhwc, ((0, 0), (pad_h, pad_h), (pad_w, pad_w), (0, 0)))
    x2d = x_pad.reshape(N, Hp, Wp * Cin)             # lane axis = Wp*Cin

    # Block-Toeplitz weight: BigW[kh*Wp*Cin + wp*Cin + c, w*Cout + o]
    #   = w_hwio[kh, wp - w, c, o]  if 0 <= wp - w < KW else 0.
    w_hwio = jnp.transpose(w_oihw, (2, 3, 1, 0)).astype(jnp.float32)  # (KH,KW,Cin,Cout)
    cols = [
        jnp.pad(w_hwio, ((0, 0), (wi, Wp - KW - wi), (0, 0), (0, 0)))
        for wi in range(W)
    ]
    bigw = jnp.stack(cols, axis=3)                   # (KH, Wp, Cin, W, Cout)
    bigw2d = bigw.reshape(KH * Wp * Cin, W * Cout)   # (216, 512) for this cfg
    b_big = jnp.tile(b.astype(jnp.float32), W).reshape(1, W * Cout)

    kernel = _make_conv_relu_kernel(H, W, Cin, Cout, KH, Wp)

    out_lane_dense = pl.pallas_call(
        kernel,
        out_shape=jax.ShapeDtypeStruct((N, H, W * Cout), jnp.float32),
        grid_spec=pltpu.PrefetchScalarGridSpec(
            num_scalar_prefetch=0,
            grid=(N,),  # 2 parallel steps -> both v7x TCs busy, tiny overhead
            in_specs=[
                # Blocks either equal full array dims or are (8,128)-aligned.
                pl.BlockSpec((1, Hp, Wp * Cin), lambda n: (n, 0, 0)),
                pl.BlockSpec((KH * Wp * Cin, W * Cout), lambda n: (0, 0)),
                pl.BlockSpec((1, W * Cout), lambda n: (0, 0)),
            ],
            out_specs=pl.BlockSpec((1, H, W * Cout), lambda n: (n, 0, 0)),
        ),
        compiler_params=pltpu.CompilerParams(
            dimension_semantics=("parallel",)
        ),
    )(x2d, bigw2d, b_big)

    out_nhwc = out_lane_dense.reshape(N, H, W, Cout)
    return jnp.transpose(out_nhwc, (0, 3, 1, 2))


def _reference_forward(x_nchw, w_oihw, b):
    """Pure-JAX reference (mirrors torch.nn.Conv2d(pad=1) + ReLU)."""
    out = jax.lax.conv_general_dilated(
        x_nchw, w_oihw,
        window_strides=(1, 1),
        padding="SAME",
        dimension_numbers=("NCHW", "OIHW", "NCHW"),
    )
    out = out + b.reshape(1, -1, 1, 1)
    return jnp.maximum(out, 0.0)


if __name__ == "__main__":
    # Module hyperparameters (BaseCNN(in_channels=4, out_channels=32)).
    in_channels = 4
    out_channels = 32
    KH = KW = 3

    # Small deterministic example input: NCHW = (2, 4, 16, 16).
    key = jax.random.PRNGKey(0)
    kx, kw, kb = jax.random.split(key, 3)
    x = jax.random.normal(kx, (2, in_channels, 16, 16), dtype=jnp.float32)

    # Deterministic parameter init (synthetic, not a checkpoint load).
    w = 0.1 * jax.random.normal(
        kw, (out_channels, in_channels, KH, KW), dtype=jnp.float32
    )
    b = 0.1 * jax.random.normal(kb, (out_channels,), dtype=jnp.float32)

    out = jax.block_until_ready(base_cnn_forward(x, w, b))
    ref = jax.block_until_ready(_reference_forward(x, w, b))

    assert out.shape == (2, out_channels, 16, 16), out.shape
    assert jnp.allclose(out, ref, rtol=1e-4, atol=1e-4), (
        float(jnp.max(jnp.abs(out - ref)))
    )
    print("KERNEL_OK")
</pallas_src>

<mosaic_0001>
module attributes {stable_mosaic.version = 11 : i64} {
  func.func @conv_relu_kernel(%arg0: i32, %arg1: memref<1x18x72xf32, #tpu.memory_space<vmem>>, %arg2: memref<216x512xf32, #tpu.memory_space<vmem>>, %arg3: memref<1x512xf32, #tpu.memory_space<vmem>>, %arg4: memref<1x16x512xf32, #tpu.memory_space<vmem>>) attributes {dimension_semantics = [#tpu.dimension_semantics<parallel>], iteration_bounds = array<i64: 2>, scalar_prefetch = 0 : i64, scratch_operands = 0 : i64, tpu.core_type = #tpu.core_type<tc>, window_params = [{transform_indices = @transform_0, window_bounds = array<i64: 1, 18, 72>}, {pipeline_mode = #tpu.pipeline_mode<synchronous>, transform_indices = @transform_1, window_bounds = array<i64: 216, 512>}, {pipeline_mode = #tpu.pipeline_mode<synchronous>, transform_indices = @transform_2, window_bounds = array<i64: 1, 512>}, {transform_indices = @transform_3, window_bounds = array<i64: 1, 16, 512>}]} {
    %c0 = arith.constant 0 : index
    %c0_0 = arith.constant 0 : index
    %c0_1 = arith.constant 0 : index
    %0 = vector.load %arg1[%c0, %c0_0, %c0_1] : memref<1x18x72xf32, #tpu.memory_space<vmem>>, vector<1x18x72xf32>
    %1 = vector.shape_cast %0 : vector<1x18x72xf32> to vector<18x72xf32>
    %2 = vector.extract_strided_slice %1 {offsets = [0, 0], sizes = [16, 72], strides = [1, 1]} : vector<18x72xf32> to vector<16x72xf32>
    %3 = vector.extract_strided_slice %1 {offsets = [1, 0], sizes = [16, 72], strides = [1, 1]} : vector<18x72xf32> to vector<16x72xf32>
    %4 = vector.extract_strided_slice %1 {offsets = [2, 0], sizes = [16, 72], strides = [1, 1]} : vector<18x72xf32> to vector<16x72xf32>
    %5 = tpu.concatenate %2, %3, %4 in 1 : vector<16x72xf32>, vector<16x72xf32>, vector<16x72xf32> -> vector<16x216xf32>
    %c0_2 = arith.constant 0 : index
    %c0_3 = arith.constant 0 : index
    %6 = vector.load %arg2[%c0_2, %c0_3] : memref<216x512xf32, #tpu.memory_space<vmem>>, vector<216x512xf32>
    %cst = arith.constant dense<0.000000e+00> : vector<16x512xf32>
    %7 = tpu.matmul %5, %6, %cst {dimension_numbers = #tpu.dot_dimension_numbers<[1], [0], [0], [1], [0, 0, 1, 1], [], []>} : vector<16x216xf32>, vector<216x512xf32>, vector<16x512xf32> -> vector<16x512xf32>
    %c0_4 = arith.constant 0 : index
    %c0_5 = arith.constant 0 : index
    %8 = vector.load %arg3[%c0_4, %c0_5] : memref<1x512xf32, #tpu.memory_space<vmem>>, vector<1x512xf32>
    %9 = vector.broadcast %8 : vector<1x512xf32> to vector<16x512xf32>
    %10 = arith.addf %7, %9 : vector<16x512xf32>
    %cst_6 = arith.constant 0.000000e+00 : f32
    %11 = vector.broadcast %cst_6 : f32 to vector<16x512xf32>
    %12 = arith.maximumf %10, %11 : vector<16x512xf32>
    %13 = vector.shape_cast %12 : vector<16x512xf32> to vector<1x16x512xf32>
    %c0_7 = arith.constant 0 : index
    %c0_8 = arith.constant 0 : index
    %c0_9 = arith.constant 0 : index
    %14 = vector.load %arg4[%c0_7, %c0_8, %c0_9] : memref<1x16x512xf32, #tpu.memory_space<vmem>>, vector<1x16x512xf32>
    tpu.vector_store %arg4[%c0_7, %c0_8, %c0_9], %13 {strides = array<i32>} : memref<1x16x512xf32, #tpu.memory_space<vmem>>, vector<1x16x512xf32>,
    return
  }
  func.func @transform_0(%arg0: i32) -> (i32, i32, i32) {
    %c0_i32 = arith.constant 0 : i32
    %c0_i32_0 = arith.constant 0 : i32
    %c0_i32_1 = arith.constant 0 : i32
    return %arg0, %c0_i32, %c0_i32_0 : i32, i32, i32
  }
  func.func @transform_1(%arg0: i32) -> (i32, i32) {
    %c0_i32 = arith.constant 0 : i32
    %c0_i32_0 = arith.constant 0 : i32
    %c0_i32_1 = arith.constant 0 : i32
    return %c0_i32, %c0_i32_0 : i32, i32
  }
  func.func @transform_2(%arg0: i32) -> (i32, i32) {
    %c0_i32 = arith.constant 0 : i32
    %c0_i32_0 = arith.constant 0 : i32
    %c0_i32_1 = arith.constant 0 : i32
    return %c0_i32, %c0_i32_0 : i32, i32
  }
  func.func @transform_3(%arg0: i32) -> (i32, i32, i32) {
    %c0_i32 = arith.constant 0 : i32
    %c0_i32_0 = arith.constant 0 : i32
    %c0_i32_1 = arith.constant 0 : i32
    return %arg0, %c0_i32, %c0_i32_0 : i32, i32, i32
  }
}

</mosaic_0001>

<llo_original>
// kernel: tpu_custom_call.1
$region0: #{tpu_custom_call.1}
  #allocation0 [shape = 'u32[]', space=smem, size = 0x4, offset = 0x4, fixed_abs, tag = 'smem constant byte address 0x4 - core index']
  #allocation1 [shape = 'u32[144,128]{1,0:T(1,128)}', space=vmem, size = 0x12000, scoped, tag = 'internal scratch']
  %s0 = inlined_call_operand.vmem [shape: f32[2,18,72], index: 0, kind: input, shape index: {}]
  %s1 = inlined_call_operand.hbm [shape: f32[216,512], index: 1, kind: input, shape index: {}]
  %s2 = inlined_call_operand.vmem [shape: f32[1,512], index: 2, kind: input, shape index: {}]
  %s3 = inlined_call_operand.hbm [shape: f32[2,16,512], index: 3, kind: output, shape index: {}]
  %s4 = sld [smem:[#allocation0]]
  $region49: #{tpu_custom_call.1} parent=0
    _
  %s6 = ssub.s32 1, %s4
  %s7 = scalar_select 0, %s6, %s4
  $region1: #{tpu_custom_call.1} parent=0
    #allocation2 [shape = 'u8[442368]{0}', space=vmem, size = 0x6c000, scoped, tag = 'input window, operand 1, single buffered']
    #allocation3 [shape = 's32[2]{0}', space=sflag, size = 0x8, scoped, tag = 'scoped memory for tpu_custom_call.1']
    #allocation4 [shape = 's32[2]{0}', space=sflag, size = 0x8, scoped, tag = 'scoped memory for tpu_custom_call.1']
    #allocation5 [shape = 'u8[65536]{0}', space=vmem, size = 0x10000, scoped, tag = 'output window, operand 0']
    %8 = vsyncpa [#allocation3], 0
    %9 = vsyncpa [#allocation4], 0
    %s10 = scalar_lea.sflag [#allocation4], 1
    %11 = vsyncpa %s10, 0
    loop: start=0, step=1, limit=4
    $region2: #{tpu_custom_call.1} parent=1 // loop_pre_header
      _
    $region3: #{tpu_custom_call.1} parent=1 // loop_header
      %s13 = sphi 0, %s17
      %p14 = scmp.ge.s32.totalorder %s13, 4
      %s23 = sphi 0, %s25
      %s26 = sphi 0, %s23
      %s27 = sphi 0, %s26
      %s43 = sphi 0, %s27
      %s47 = sphi 0, %s47
      %s49 = sphi 0, %s47
      %s50 = sphi 0, %s49
      %s64 = sphi 0, %s50
      %s68 = sphi 0, %s68
      %s70 = sphi 0, %s68
      %s71 = sphi 0, %s70
      %s85 = sphi 0, %s71
      %s91 = sphi 0, %s93
      %s94 = sphi 0, %s91
      %s95 = sphi 0, %s94
      %s111 = sphi 0, %s95
    $region4: #{tpu_custom_call.1} parent=1 // loop_header_branch
      %16 = sbr.rel (%p14) target = $region8
    $region5: #{tpu_custom_call.1} parent=1 // loop_body
      %s18 = ssub.s32 %s13, 1
      %s19 = ssub.s32 %s13, 2
      %s20 = sadd.s32 %s13, 1
      %s21 = ssub.s32 %s13, %s20
      %p22 = scmp.eq.s32.totalorder %s21, 0
      %s24 = sadd.s32 %s23, 1
      %s25 = scalar_select %p22, %s23, %s24
      %p28 = pneg %p22
      %p29 = scmp.eq.s32.totalorder %s13, 1
      %p30 = por %p28, %p29
      %p31 = scmp.ne.s32.totalorder %s23, %s26
      %p32 = scmp.eq.s32.totalorder %s13, 0
      %p33 = por %p31, %p32
      %p34 = scmp.ne.s32.totalorder %s23, %s26
      %p35 = scmp.eq.s32.totalorder %s18, 1
      %p36 = por %p34, %p35
      %p37 = scmp.ne.s32.totalorder %s26, %s27
      %p38 = scmp.eq.s32.totalorder %s18, 0
      %p39 = por %p37, %p38
      %p40 = scmp.ne.s32.totalorder %s26, %s27
      %p41 = scmp.eq.s32.totalorder %s19, 1
      %p42 = por %p40, %p41
      %p44 = scmp.ne.s32.totalorder %s27, %s43
      %p45 = scmp.eq.s32.totalorder %s19, 0
      %p46 = por %p44, %p45
      %s48 = sadd.s32 %s47, 1
      %p51 = scmp.eq.s32.totalorder %s13, 1
      %p52 = scmp.ne.s32.totalorder %s47, %s49
      %p53 = scmp.eq.s32.totalorder %s13, 0
      %p54 = por %p52, %p53
      %p55 = scmp.ne.s32.totalorder %s47, %s49
      %p56 = scmp.eq.s32.totalorder %s18, 1
      %p57 = por %p55, %p56
      %p58 = scmp.ne.s32.totalorder %s49, %s50
      %p59 = scmp.eq.s32.totalorder %s18, 0
      %p60 = por %p58, %p59
      %p61 = scmp.ne.s32.totalorder %s49, %s50
      %p62 = scmp.eq.s32.totalorder %s19, 1
      %p63 = por %p61, %p62
      %p65 = scmp.ne.s32.totalorder %s50, %s64
      %p66 = scmp.eq.s32.totalorder %s19, 0
      %p67 = por %p65, %p66
      %s69 = sadd.s32 %s68, 1
      %p72 = scmp.eq.s32.totalorder %s13, 1
      %p73 = scmp.ne.s32.totalorder %s68, %s70
      %p74 = scmp.eq.s32.totalorder %s13, 0
      %p75 = por %p73, %p74
      %p76 = scmp.ne.s32.totalorder %s68, %s70
      %p77 = scmp.eq.s32.totalorder %s18, 1
      %p78 = por %p76, %p77
      %p79 = scmp.ne.s32.totalorder %s70, %s71
      %p80 = scmp.eq.s32.totalorder %s18, 0
      %p81 = por %p79, %p80
      %p82 = scmp.ne.s32.totalorder %s70, %s71
      %p83 = scmp.eq.s32.totalorder %s19, 1
      %p84 = por %p82, %p83
      %p86 = scmp.ne.s32.totalorder %s71, %s85
      %p87 = scmp.eq.s32.totalorder %s19, 0
      %p88 = por %p86, %p87
      %s89 = ssub.s32 %s13, %s20
      %p90 = scmp.eq.s32.totalorder %s89, 0
      %s92 = sadd.s32 %s91, 1
      %s93 = scalar_select %p90, %s91, %s92
      %p96 = pneg %p90
      %p97 = scmp.eq.s32.totalorder %s13, 1
      %p98 = por %p96, %p97
      %p99 = scmp.ne.s32.totalorder %s91, %s94
      %p100 = scmp.eq.s32.totalorder %s13, 0
      %p101 = por %p99, %p100
      %p102 = scmp.ne.s32.totalorder %s91, %s94
      %p103 = scmp.eq.s32.totalorder %s18, 1
      %p104 = por %p102, %p103
      %p105 = scmp.ne.s32.totalorder %s94, %s95
      %p106 = scmp.eq.s32.totalorder %s18, 0
      %p107 = por %p105, %p106
      %p108 = scmp.ne.s32.totalorder %s94, %s95
      %p109 = scmp.eq.s32.totalorder %s19, 1
      %p110 = por %p108, %p109
      %p112 = scmp.ne.s32.totalorder %s95, %s111
      %p113 = scmp.eq.s32.totalorder %s19, 0
      %p114 = por %p112, %p113
      %p115 = scmp.le.s32.totalorder 1, %s13
      %p116 = scmp.lt.s32.totalorder %s13, 3
      %p117 = pnand %p115, %p116
      %p118 = pneg %p117
      // Predicated region
      $region9: #{tpu_custom_call.1} parent=5 // pred_check
        _
      $region10: #{tpu_custom_call.1} parent=5 // pred_check_branch
        %120 = sbr.rel (%p117) target = $region12
      $region11: #{tpu_custom_call.1} parent=5 // pred_region
        %s121 = ssub.s32 %s13, 1
        // Predicated region
        $region13: #{tpu_custom_call.1} parent=11 // pred_check
          %p122 = pneg %p60
        $region14: #{tpu_custom_call.1} parent=11 // pred_check_branch
          %124 = sbr.rel (%p122) target = $region16
        $region15: #{tpu_custom_call.1} parent=11 // pred_region
          %s126 = ssub.s32 13824, 13824
          %127 = vsyncadd [#allocation3], %s126
          %s128 = sshll.u32 [#allocation2], 4
          %s129 = int_to_ptr.vmem [resolvable:$true] %s128
          %134 = dma.hbm_to_vmem [thread:$0]  %s1, 13824, %s129, [#allocation3], 512, 512, 32
        $region16: #{tpu_custom_call.1} parent=11 // pred_fallthru
          _
        // Predicated region
        $region17: #{tpu_custom_call.1} parent=11 // pred_check
          %p135 = pneg %p81
        $region18: #{tpu_custom_call.1} parent=11 // pred_check_branch
          %137 = sbr.rel (%p135) target = $region20
        $region19: #{tpu_custom_call.1} parent=11 // pred_region
          _
        $region20: #{tpu_custom_call.1} parent=11 // pred_fallthru
          _
      $region12: #{tpu_custom_call.1} parent=5 // pred_fallthru
        _
      %p138 = scmp.lt.s32.totalorder %s13, 2
      // Predicated region
      $region21: #{tpu_custom_call.1} parent=5 // pred_check
        %p139 = pneg %p138
      $region22: #{tpu_custom_call.1} parent=5 // pred_check_branch
        %141 = sbr.rel (%p139) target = $region24
      $region23: #{tpu_custom_call.1} parent=5 // pred_region
        // Predicated region
        $region25: #{tpu_custom_call.1} parent=23 // pred_check
          %p142 = pneg %p33
        $region26: #{tpu_custom_call.1} parent=23 // pred_check_branch
          %144 = sbr.rel (%p142) target = $region28
        $region27: #{tpu_custom_call.1} parent=23 // pred_region
          %p145 = scmp.lt.s32.totalorder %s13, 1
          %s146 = scalar_select %p145, %s13, 1
          %s147 = smul.addr %s146, 3
          %s148 = smul.addr %s147, 8
          %s149 = scalar_lea.vmem %s0, %s148
        $region28: #{tpu_custom_call.1} parent=23 // pred_fallthru
          _
      $region24: #{tpu_custom_call.1} parent=5 // pred_fallthru
        _
      %p150 = scmp.le.s32.totalorder 1, %s13
      %p151 = scmp.lt.s32.totalorder %s13, 3
      %p152 = pnand %p150, %p151
      %p153 = pneg %p152
      // Predicated region
      $region29: #{tpu_custom_call.1} parent=5 // pred_check
        _
      $region30: #{tpu_custom_call.1} parent=5 // pred_check_branch
        %155 = sbr.rel (%p152) target = $region32
      $region31: #{tpu_custom_call.1} parent=5 // pred_region
        %s156 = ssub.s32 %s13, 1
        // Predicated region
        $region33: #{tpu_custom_call.1} parent=31 // pred_check
          %p157 = pneg %p60
        $region34: #{tpu_custom_call.1} parent=31 // pred_check_branch
          %159 = sbr.rel (%p157) target = $region36
        $region35: #{tpu_custom_call.1} parent=31 // pred_region
          %160 = dma.done [#allocation3], 13824
        $region36: #{tpu_custom_call.1} parent=31 // pred_fallthru
          _
        %p161 = scmp.lt.s32.totalorder %s18, 1
        %s162 = scalar_select %p161, %s18, 1
        %s163 = smul.addr %s162, 3
        %s164 = smul.addr %s163, 8
        %s165 = scalar_lea.vmem %s0, %s164
        %p166 = pneg %p39
        %p167 = pneg %p36
        %p168 = pneg %p60
        %p169 = pneg %p57
        %p170 = pneg %p81
        %p171 = pneg %p78
        %p172 = pneg %p107
        %p173 = pneg %p104
        %s174 = sand.u32 %s94, 1
        %s175 = scalar_lea.sflag [#allocation4], %s174
        %s176 = sand.u32 %s94, 1
        %s177 = smul.addr %s176, 64
        %s178 = scalar_lea.vmem [#allocation5], %s177
        %p179 = scmp.lt.s32.totalorder %s18, 1
        %s180 = scalar_select %p179, %s18, 1
        %s181 = smul.addr %s180, 3
        %s182 = smul.addr %s181, 8
        %s183 = scalar_lea.vmem %s0, %s182
        %v184 = vld [vmem:[%s183] sm:$0xff]
        %v185 = vld [vmem:[%s183 + $0x8] sm:$0xff]
        %v186 = vld [vmem:[%s183 + $0x10] sm:$0x3]
        %vm190 = vcmask 1046528
        %v191 = vrot.slane %v184, 1
        %v192 = vrot.slane %v185, 1
        %v193 = vsel %vm190, %v191, %v192
        %v194 = vrot.slane %v186, 1
        %v195 = vsel %vm190, %v192, %v194
        %196 = vrot.lane.b32.xlu0 %v193, 72
        %v197 = vpop.permute.xlu0 %196
        %198 = vrot.lane.b32.xlu0 %v195, 72
        %v199 = vpop.permute.xlu0 %198
        %vm202 = vcmask 1045504
        %v203 = vrot.slane %v184, 2
        %v204 = vrot.slane %v185, 2
        %v205 = vsel %vm202, %v203, %v204
        %v206 = vrot.slane %v186, 2
        %v207 = vsel %vm202, %v204, %v206
        %208 = vrot.lane.b32.xlu0 %v205, 16
        %v209 = vpop.permute.xlu0 %208
        %210 = vrot.lane.b32.xlu0 %v207, 16
        %v211 = vpop.permute.xlu0 %210
        %vm214 = vcmask 588800
        %v215 = vsel %vm214, %v184, %v197
        %v216 = vsel %vm214, %v185, %v199
        %vm217 = vcmask 130048
        %v218 = vsel %vm217, %v197, %v209
        %v219 = vsel %vm217, %v199, %v211
        %v220 = vld [vmem:[#allocation2] sm:$0xff]
        %v221 = vld [vmem:[#allocation2 + $0x8] sm:$0xff]
        %v222 = vld [vmem:[#allocation2 + $0x10] sm:$0xff]
        %v223 = vld [vmem:[#allocation2 + $0x18] sm:$0xff]
        %v224 = vld [vmem:[#allocation2 + $0x20] sm:$0xff]
        %v225 = vld [vmem:[#allocation2 + $0x28] sm:$0xff]
        %v226 = vld [vmem:[#allocation2 + $0x30] sm:$0xff]
        %v227 = vld [vmem:[#allocation2 + $0x38] sm:$0xff]
        %v228 = vld [vmem:[#allocation2 + $0x40] sm:$0xff]
        %v229 = vld [vmem:[#allocation2 + $0x48] sm:$0xff]
        %v230 = vld [vmem:[#allocation2 + $0x50] sm:$0xff]
        %v231 = vld [vmem:[#allocation2 + $0x58] sm:$0xff]
        %v232 = vld [vmem:[#allocation2 + $0x60] sm:$0xff]
        %v233 = vld [vmem:[#allocation2 + $0x68] sm:$0xff]
        %v234 = vld [vmem:[#allocation2 + $0x70] sm:$0xff]
        %v235 = vld [vmem:[#allocation2 + $0x78] sm:$0xff]
        %v236 = vld [vmem:[#allocation2 + $0x80] sm:$0xff]
        %v237 = vld [vmem:[#allocation2 + $0x88] sm:$0xff]
        %v238 = vld [vmem:[#allocation2 + $0x90] sm:$0xff]
        %v239 = vld [vmem:[#allocation2 + $0x98] sm:$0xff]
        %v240 = vld [vmem:[#allocation2 + $0xa0] sm:$0xff]
        %v241 = vld [vmem:[#allocation2 + $0xa8] sm:$0xff]
        %v242 = vld [vmem:[#allocation2 + $0xb0] sm:$0xff]
        %v243 = vld [vmem:[#allocation2 + $0xb8] sm:$0xff]
        %v244 = vld [vmem:[#allocation2 + $0xc0] sm:$0xff]
        %v245 = vld [vmem:[#allocation2 + $0xc8] sm:$0xff]
        %v246 = vld [vmem:[#allocation2 + $0xd0] sm:$0xff]
        %v247 = vld [vmem:[#allocation2 + $0xd8] sm:$0xff]
        %v248 = vld [vmem:[#allocation2 + $0xe0] sm:$0xff]
        %v249 = vld [vmem:[#allocation2 + $0xe8] sm:$0xff]
        %v250 = vld [vmem:[#allocation2 + $0xf0] sm:$0xff]
        %v251 = vld [vmem:[#allocation2 + $0xf8] sm:$0xff]
        %v252 = vld [vmem:[#allocation2 + $0x100] sm:$0xff]
        %v253 = vld [vmem:[#allocation2 + $0x108] sm:$0xff]
        %v254 = vld [vmem:[#allocation2 + $0x110] sm:$0xff]
        %v255 = vld [vmem:[#allocation2 + $0x118] sm:$0xff]
        %v256 = vld [vmem:[#allocation2 + $0x120] sm:$0xff]
        %v257 = vld [vmem:[#allocation2 + $0x128] sm:$0xff]
        %v258 = vld [vmem:[#allocation2 + $0x130] sm:$0xff]
        %v259 = vld [vmem:[#allocation2 + $0x138] sm:$0xff]
        %v260 = vld [vmem:[#allocation2 + $0x140] sm:$0xff]
        %v261 = vld [vmem:[#allocation2 + $0x148] sm:$0xff]
        %v262 = vld [vmem:[#allocation2 + $0x150] sm:$0xff]
        %v263 = vld [vmem:[#allocation2 + $0x158] sm:$0xff]
        %v264 = vld [vmem:[#allocation2 + $0x160] sm:$0xff]
        %v265 = vld [vmem:[#allocation2 + $0x168] sm:$0xff]
        %v266 = vld [vmem:[#allocation2 + $0x170] sm:$0xff]
        %v267 = vld [vmem:[#allocation2 + $0x178] sm:$0xff]
        %v268 = vld [vmem:[#allocation2 + $0x180] sm:$0xff]
        %v269 = vld [vmem:[#allocation2 + $0x188] sm:$0xff]
        %v270 = vld [vmem:[#allocation2 + $0x190] sm:$0xff]
        %v271 = vld [vmem:[#allocation2 + $0x198] sm:$0xff]
        %v272 = vld [vmem:[#allocation2 + $0x1a0] sm:$0xff]
        %v273 = vld [vmem:[#allocation2 + $0x1a8] sm:$0xff]
        %v274 = vld [vmem:[#allocation2 + $0x1b0] sm:$0xff]
        %v275 = vld [vmem:[#allocation2 + $0x1b8] sm:$0xff]
        %v276 = vld [vmem:[#allocation2 + $0x1c0] sm:$0xff]
        %v277 = vld [vmem:[#allocation2 + $0x1c8] sm:$0xff]
        %v278 = vld [vmem:[#allocation2 + $0x1d0] sm:$0xff]
        %v279 = vld [vmem:[#allocation2 + $0x1d8] sm:$0xff]
        %v280 = vld [vmem:[#allocation2 + $0x1e0] sm:$0xff]
        %v281 = vld [vmem:[#allocation2 + $0x1e8] sm:$0xff]
        %v282 = vld [vmem:[#allocation2 + $0x1f0] sm:$0xff]
        %v283 = vld [vmem:[#allocation2 + $0x1f8] sm:$0xff]
        %v284 = vld [vmem:[#allocation2 + $0x200] sm:$0xff]
        %v285 = vld [vmem:[#allocation2 + $0x208] sm:$0xff]
        %v286 = vld [vmem:[#allocation2 + $0x210] sm:$0xff]
        %v287 = vld [vmem:[#allocation2 + $0x218] sm:$0xff]
        %v288 = vld [vmem:[#allocation2 + $0x220] sm:$0xff]
        %v289 = vld [vmem:[#allocation2 + $0x228] sm:$0xff]
        %v290 = vld [vmem:[#allocation2 + $0x230] sm:$0xff]
        %v291 = vld [vmem:[#allocation2 + $0x238] sm:$0xff]
        %v292 = vld [vmem:[#allocation2 + $0x240] sm:$0xff]
        %v293 = vld [vmem:[#allocation2 + $0x248] sm:$0xff]
        %v294 = vld [vmem:[#allocation2 + $0x250] sm:$0xff]
        %v295 = vld [vmem:[#allocation2 + $0x258] sm:$0xff]
        %v296 = vld [vmem:[#allocation2 + $0x260] sm:$0xff]
        %v297 = vld [vmem:[#allocation2 + $0x268] sm:$0xff]
        %v298 = vld [vmem:[#allocation2 + $0x270] sm:$0xff]
        %v299 = vld [vmem:[#allocation2 + $0x278] sm:$0xff]
        %v300 = vld [vmem:[#allocation2 + $0x280] sm:$0xff]
        %v301 = vld [vmem:[#allocation2 + $0x288] sm:$0xff]
        %v302 = vld [vmem:[#allocation2 + $0x290] sm:$0xff]
        %v303 = vld [vmem:[#allocation2 + $0x298] sm:$0xff]
        %v304 = vld [vmem:[#allocation2 + $0x2a0] sm:$0xff]
        %v305 = vld [vmem:[#allocation2 + $0x2a8] sm:$0xff]
        %v306 = vld [vmem:[#allocation2 + $0x2b0] sm:$0xff]
        %v307 = vld [vmem:[#allocation2 + $0x2b8] sm:$0xff]
        %v308 = vld [vmem:[#allocation2 + $0x2c0] sm:$0xff]
        %v309 = vld [vmem:[#allocation2 + $0x2c8] sm:$0xff]
        %v310 = vld [vmem:[#allocation2 + $0x2d0] sm:$0xff]
        %v311 = vld [vmem:[#allocation2 + $0x2d8] sm:$0xff]
        %v312 = vld [vmem:[#allocation2 + $0x2e0] sm:$0xff]
        %v313 = vld [vmem:[#allocation2 + $0x2e8] sm:$0xff]
        %v314 = vld [vmem:[#allocation2 + $0x2f0] sm:$0xff]
        %v315 = vld [vmem:[#allocation2 + $0x2f8] sm:$0xff]
        %v316 = vld [vmem:[#allocation2 + $0x300] sm:$0xff]
        %v317 = vld [vmem:[#allocation2 + $0x308] sm:$0xff]
        %v318 = vld [vmem:[#allocation2 + $0x310] sm:$0xff]
        %v319 = vld [vmem:[#allocation2 + $0x318] sm:$0xff]
        %v320 = vld [vmem:[#allocation2 + $0x320] sm:$0xff]
        %v321 = vld [vmem:[#allocation2 + $0x328] sm:$0xff]
        %v322 = vld [vmem:[#allocation2 + $0x330] sm:$0xff]
        %v323 = vld [vmem:[#allocation2 + $0x338] sm:$0xff]
        %v324 = vld [vmem:[#allocation2 + $0x340] sm:$0xff]
        %v325 = vld [vmem:[#allocation2 + $0x348] sm:$0xff]
        %v326 = vld [vmem:[#allocation2 + $0x350] sm:$0xff]
        %v327 = vld [vmem:[#allocation2 + $0x358] sm:$0xff]
        %v328 = vld [vmem:[%s2] sm:$0xf]
        %v330 = vlaneseq
        %v331 = vshrl.u32 %v330, 7
        %v332 = vsub.s32 0, %v331
        %v333 = vrot.slane %v328, %v332
        %v334 = vlaneseq
        %v335 = vshrl.u32 %v334, 7
        %v336 = vsub.s32 1, %v335
        %v337 = vrot.slane %v328, %v336
        %v338 = vlaneseq
        %v339 = vshrl.u32 %v338, 7
        %v340 = vsub.s32 2, %v339
        %v341 = vrot.slane %v328, %v340
        %v342 = vlaneseq
        %v343 = vshrl.u32 %v342, 7
        %v344 = vsub.s32 3, %v343
        %v345 = vrot.slane %v328, %v344
        %vm350 = vcmask 719872
        %v352 = vsel %vm350, %v218, 0
        %v355 = vsel %vm350, %v219, 0
        %357 = vmatprep.subr.mxu0 %v221
        %358 = vmatpush1.msra.mxu0 %v220
        %359 = vmatprep.subr.mxu0 %v225
        %360 = vmatpush1.msra.mxu0 %v224
        %361 = vmatprep.subr.mxu0 %v229
        %362 = vmatpush1.msra.mxu0 %v228
        %363 = vmatprep.subr.mxu0 %v233
        %364 = vmatpush1.msra.mxu0 %v232
        %365 = vmatprep.subr.mxu0 %v237
        %366 = vmatpush1.msra.mxu0 %v236
        %367 = vmatprep.subr.mxu0 %v241
        %368 = vmatpush1.msra.mxu0 %v240
        %369 = vmatprep.subr.mxu0 %v245
        %370 = vmatpush1.msra.mxu0 %v244
        %371 = vmatprep.subr.mxu0 %v249
        %372 = vmatpush1.msra.mxu0 %v248
        %373 = vmatprep.subr.mxu0 %v253
        %374 = vmatpush1.msra.mxu0 %v252
        %375 = vmatprep.subr.mxu0 %v257
        %376 = vmatpush1.msra.mxu0 %v256
        %377 = vmatprep.subr.mxu0 %v261
        %378 = vmatpush1.msra.mxu0 %v260
        %379 = vmatprep.subr.mxu0 %v265
        %380 = vmatpush1.msra.mxu0 %v264
        %381 = vmatprep.subr.mxu0 %v269
        %382 = vmatpush1.msra.mxu0 %v268
        %383 = vmatprep.subr.mxu0 %v273
        %384 = vmatpush1.msra.mxu0 %v272
        %385 = vmatprep.subr.mxu0 %v277
        %386 = vmatpush1.msra.mxu0 %v276
        %387 = vmatprep.subr.mxu0 %v281
        %388 = vmatpush1.msra.mxu0 %v280
        %389 = vmatprep.subr.mxu0 %v285
        %390 = vmatpush1.msra.mxu0 %v284
        %391 = vmatprep.subr.mxu0 %v289
        %392 = vmatpush1.msra.mxu0 %v288
        %393 = vmatprep.subr.mxu0 %v293
        %394 = vmatpush1.msra.mxu0 %v292
        %395 = vmatprep.subr.mxu0 %v297
        %396 = vmatpush1.msra.mxu0 %v296
        %397 = vmatprep.subr.mxu0 %v301
        %398 = vmatpush1.msra.mxu0 %v300
        %399 = vmatprep.subr.mxu0 %v305
        %400 = vmatpush1.msra.mxu0 %v304
        %401 = vmatprep.subr.mxu0 %v309
        %402 = vmatpush1.msra.mxu0 %v308
        %403 = vmatprep.subr.mxu0 %v313
        %404 = vmatpush1.msra.mxu0 %v312
        %405 = vmatprep.subr.mxu0 %v317
        %406 = vmatpush1.msra.mxu0 %v316
        %407 = vmatprep.subr.mxu0 %v321
        %408 = vmatpush1.msra.mxu0 %v320
        %409 = vmatprep.subr.mxu0 %v325
        %410 = vmatpush1.msra.mxu0 %v324
        %411 = vmatprep.subr.mxu0 0.0
        %412 = vmatpush1.msra.mxu0 0.0
        %413 = vmatprep.subr.mxu0 0.0
        %414 = vmatpush1.msra.mxu0 0.0
        %415 = vmatprep.subr.mxu0 0.0
        %416 = vmatpush1.msra.mxu0 0.0
        %417 = vmatprep.subr.mxu0 0.0
        %418 = vmatpush1.msra.mxu0 0.0
        %419 = vmatprep.subr.mxu0 0.0
        %420 = vmatpush1.msra.mxu0 0.0
        %421 = vmatprep.mubr.f32.mxu0 %v352
        %422 = vmatmul.mubr.f32.gmra.mrb[0].mxu0 %v215
        %v423 = vpop.f32.mrb[0].mxu0
        %v424 = vadd.f32 %v333, %v423
        %v425 = vpop.f32.mrb[0].mxu0
        %v426 = vadd.f32 %v337, %v425
        %427 = vmatprep.mubr.f32.mxu0 %v355
        %428 = vmatmul.mubr.f32.gmra.mrb[0].mxu0 %v216
        %v429 = vpop.f32.mrb[0].mxu0
        %v430 = vadd.f32 %v333, %v429
        %v431 = vpop.f32.mrb[0].mxu0
        %v432 = vadd.f32 %v337, %v431
        %433 = vdwg.mxu0
        %434 = vmatprep.subr.mxu0 %v223
        %435 = vmatpush1.msra.mxu0 %v222
        %436 = vmatprep.subr.mxu0 %v227
        %437 = vmatpush1.msra.mxu0 %v226
        %438 = vmatprep.subr.mxu0 %v231
        %439 = vmatpush1.msra.mxu0 %v230
        %440 = vmatprep.subr.mxu0 %v235
        %441 = vmatpush1.msra.mxu0 %v234
        %442 = vmatprep.subr.mxu0 %v239
        %443 = vmatpush1.msra.mxu0 %v238
        %444 = vmatprep.subr.mxu0 %v243
        %445 = vmatpush1.msra.mxu0 %v242
        %446 = vmatprep.subr.mxu0 %v247
        %447 = vmatpush1.msra.mxu0 %v246
        %448 = vmatprep.subr.mxu0 %v251
        %449 = vmatpush1.msra.mxu0 %v250
        %450 = vmatprep.subr.mxu0 %v255
        %451 = vmatpush1.msra.mxu0 %v254
        %452 = vmatprep.subr.mxu0 %v259
        %453 = vmatpush1.msra.mxu0 %v258
        %454 = vmatprep.subr.mxu0 %v263
        %455 = vmatpush1.msra.mxu0 %v262
        %456 = vmatprep.subr.mxu0 %v267
        %457 = vmatpush1.msra.mxu0 %v266
        %458 = vmatprep.subr.mxu0 %v271
        %459 = vmatpush1.msra.mxu0 %v270
        %460 = vmatprep.subr.mxu0 %v275
        %461 = vmatpush1.msra.mxu0 %v274
        %462 = vmatprep.subr.mxu0 %v279
        %463 = vmatpush1.msra.mxu0 %v278
        %464 = vmatprep.subr.mxu0 %v283
        %465 = vmatpush1.msra.mxu0 %v282
        %466 = vmatprep.subr.mxu0 %v287
        %467 = vmatpush1.msra.mxu0 %v286
        %468 = vmatprep.subr.mxu0 %v291
        %469 = vmatpush1.msra.mxu0 %v290
        %470 = vmatprep.subr.mxu0 %v295
        %471 = vmatpush1.msra.mxu0 %v294
        %472 = vmatprep.subr.mxu0 %v299
        %473 = vmatpush1.msra.mxu0 %v298
        %474 = vmatprep.subr.mxu0 %v303
        %475 = vmatpush1.msra.mxu0 %v302
        %476 = vmatprep.subr.mxu0 %v307
        %477 = vmatpush1.msra.mxu0 %v306
        %478 = vmatprep.subr.mxu0 %v311
        %479 = vmatpush1.msra.mxu0 %v310
        %480 = vmatprep.subr.mxu0 %v315
        %481 = vmatpush1.msra.mxu0 %v314
        %482 = vmatprep.subr.mxu0 %v319
        %483 = vmatpush1.msra.mxu0 %v318
        %484 = vmatprep.subr.mxu0 %v323
        %485 = vmatpush1.msra.mxu0 %v322
        %486 = vmatprep.subr.mxu0 %v327
        %487 = vmatpush1.msra.mxu0 %v326
        %488 = vmatprep.subr.mxu0 0.0
        %489 = vmatpush1.msra.mxu0 0.0
        %490 = vmatprep.subr.mxu0 0.0
        %491 = vmatpush1.msra.mxu0 0.0
        %492 = vmatprep.subr.mxu0 0.0
        %493 = vmatpush1.msra.mxu0 0.0
        %494 = vmatprep.subr.mxu0 0.0
        %495 = vmatpush1.msra.mxu0 0.0
        %496 = vmatprep.subr.mxu0 0.0
        %497 = vmatpush1.msra.mxu0 0.0
        %498 = vmatprep.mubr.f32.mxu0 %v352
        %499 = vmatmul.mubr.f32.gmra.mrb[0].mxu0 %v215
        %v500 = vpop.f32.mrb[0].mxu0
        %v501 = vadd.f32 %v341, %v500
        %v502 = vpop.f32.mrb[0].mxu0
        %v503 = vadd.f32 %v345, %v502
        %504 = vmatprep.mubr.f32.mxu0 %v355
        %505 = vmatmul.mubr.f32.gmra.mrb[0].mxu0 %v216
        %v506 = vpop.f32.mrb[0].mxu0
        %v507 = vadd.f32 %v341, %v506
        %v508 = vpop.f32.mrb[0].mxu0
        %v509 = vadd.f32 %v345, %v508
        %510 = vdwg.mxu0
        %v511 = vmax.f32 %v424, 0.0
        %v512 = vmax.f32 %v426, 0.0
        %v513 = vmax.f32 %v501, 0.0
        %v514 = vmax.f32 %v503, 0.0
        %v515 = vmax.f32 %v430, 0.0
        %v516 = vmax.f32 %v432, 0.0
        %v517 = vmax.f32 %v507, 0.0
        %v518 = vmax.f32 %v509, 0.0
        %519 = vst [vmem:[%s178] sm:$0xff] %v511
        %520 = vst [vmem:[%s178 + $0x8] sm:$0xff] %v512
        %521 = vst [vmem:[%s178 + $0x10] sm:$0xff] %v513
        %522 = vst [vmem:[%s178 + $0x18] sm:$0xff] %v514
        %523 = vst [vmem:[%s178 + $0x20] sm:$0xff] %v515
        %524 = vst [vmem:[%s178 + $0x28] sm:$0xff] %v516
        %525 = vst [vmem:[%s178 + $0x30] sm:$0xff] %v517
        %526 = vst [vmem:[%s178 + $0x38] sm:$0xff] %v518
        %s527 = sand.u32 %s94, 1
        %s528 = scalar_lea.sflag [#allocation4], %s527
        %s529 = sand.u32 %s94, 1
        %s530 = smul.addr %s529, 64
        %s531 = scalar_lea.vmem [#allocation5], %s530
        // Predicated region
        $region37: #{tpu_custom_call.1} parent=31 // pred_check
          %p532 = pneg %p104
        $region38: #{tpu_custom_call.1} parent=31 // pred_check_branch
          %534 = sbr.rel (%p532) target = $region40
        $region39: #{tpu_custom_call.1} parent=31 // pred_region
          %s536 = ssub.s32 1024, 1024
          %537 = vsyncadd %s528, %s536
          %s538 = smul.addr %s18, 8
          %s539 = smul.addr %s538, 128
          %s540 = scalar_lea.hbm %s3, %s539
          %s541 = sshll.u32 %s531, 4
          %s542 = int_to_ptr.vmem [resolvable:$true] %s541
          %547 = dma.vmem_to_hbm [thread:$0]  %s542, 1024, %s540, %s528, 512, 512, 32
        $region40: #{tpu_custom_call.1} parent=31 // pred_fallthru
          _
      $region32: #{tpu_custom_call.1} parent=5 // pred_fallthru
        _
      %p548 = scmp.le.s32.totalorder 2, %s13
      // Predicated region
      $region41: #{tpu_custom_call.1} parent=5 // pred_check
        %p549 = pneg %p548
      $region42: #{tpu_custom_call.1} parent=5 // pred_check_branch
        %551 = sbr.rel (%p549) target = $region44
      $region43: #{tpu_custom_call.1} parent=5 // pred_region
        %s552 = ssub.s32 %s13, 2
        // Predicated region
        $region45: #{tpu_custom_call.1} parent=43 // pred_check
          %p553 = pneg %p110
        $region46: #{tpu_custom_call.1} parent=43 // pred_check_branch
          %555 = sbr.rel (%p553) target = $region48
        $region47: #{tpu_custom_call.1} parent=43 // pred_region
          %s556 = sand.u32 %s95, 1
          %s557 = scalar_lea.sflag [#allocation4], %s556
          %s558 = sand.u32 %s95, 1
          %s559 = smul.addr %s558, 64
          %s560 = scalar_lea.vmem [#allocation5], %s559
          %561 = dma.done %s557, 1024
        $region48: #{tpu_custom_call.1} parent=43 // pred_fallthru
          _
      $region44: #{tpu_custom_call.1} parent=5 // pred_fallthru
        _
    $region6: #{tpu_custom_call.1} parent=1 // loop_footer
      %s17 = sadd.s32 1, %s13
    $region7: #{tpu_custom_call.1} parent=1 // loop_footer_branch
      %12 = sbr.rel target = $region3
    $region8: #{tpu_custom_call.1} parent=1 // loop_exit
      _
    %562 = vsyncpa [#allocation3], 1
    %s563 = scalar_lea.sflag [#allocation3], 1
    %564 = vsyncpa %s563, 1
    %565 = vsyncpa [#allocation4], 1
    %s566 = scalar_lea.sflag [#allocation4], 1
    %567 = vsyncpa %s566, 1

</llo_original>
